<compile_context>
chip_gen: v6e
topology: v6e:2x2x1
jax: 0.10.0
libtpu: 0.0.40
codegen_flags: <defaults>
</compile_context>

<pallas_src>
import functools

import jax
import jax.numpy as jnp
from jax import lax
from jax.experimental import pallas as pl
from jax.experimental.pallas import tpu as pltpu


# ---------------------------------------------------------------------------
# Kernel
# ---------------------------------------------------------------------------
def _channel_attention_kernel(x_ref, w1_ref, w2_ref, out_ref, sum_ref, max_ref,
                              *, true_l, l_tile, l_is_padded):
    l_idx = pl.program_id(1)

    @pl.when(l_idx == 0)
    def _init():
        sum_ref[...] = jnp.zeros_like(sum_ref)
        max_ref[...] = jnp.full_like(max_ref, -jnp.inf)

    x = x_ref[...]                                            # (tb, C, tl), native dtype
    # Running reductions over the length axis; f32 accumulation without
    # materializing a full f32 copy of the tile.
    sum_ref[...] += jnp.sum(x, axis=-1, dtype=jnp.float32)    # (tb, C)

    if l_is_padded:
        # Mask the zero-padded tail of L so it cannot win the max.
        col = l_idx * l_tile + lax.broadcasted_iota(jnp.int32, x.shape, 2)
        x = jnp.where(col < true_l, x, jnp.asarray(-jnp.inf, dtype=x.dtype))
    max_ref[...] = jnp.maximum(max_ref[...],
                               jnp.max(x, axis=-1).astype(jnp.float32))

    @pl.when(l_idx == pl.num_programs(1) - 1)
    def _finalize():
        w1 = w1_ref[...].astype(jnp.float32)                  # (H, C)  fc1 (1x1 conv)
        w2 = w2_ref[...].astype(jnp.float32)                  # (C, H)  fc2 (1x1 conv)

        avg = sum_ref[...] * (1.0 / true_l)                   # (tb, C)
        mx = max_ref[...]                                     # (tb, C)

        # Fuse avg+max paths into one batched MLP with a real M dimension.
        p = jnp.concatenate([avg, mx], axis=0)                # (2*tb, C)
        h = lax.dot_general(p, w1, (((1,), (1,)), ((), ())),
                            preferred_element_type=jnp.float32)   # (2*tb, H)
        h = jnp.maximum(h, 0.0)                               # ReLU
        y = lax.dot_general(h, w2, (((1,), (1,)), ((), ())),
                            preferred_element_type=jnp.float32)   # (2*tb, C)

        tb = out_ref.shape[0]
        out_ref[...] = jax.nn.sigmoid(y[:tb, :] + y[tb:, :]).astype(out_ref.dtype)


# ---------------------------------------------------------------------------
# Tiling heuristics
# ---------------------------------------------------------------------------
def _round_up(x, m):
    return ((x + m - 1) // m) * m


def _vmem_capacity_bytes():
    try:
        return int(pltpu.get_tpu_info().vmem_capacity_bytes)
    except Exception:
        return 64 << 20   # conservative default (v7x per-TC VMEM)


def _num_tensorcores():
    try:
        kind = jax.devices()[0].device_kind.lower()
    except Exception:
        return 1
    return 2 if any(tag in kind for tag in ("v7", "v5p", "v4")) else 1


def _pick_tiles(B, C, L, itemsize):
    """Pick (tb, tl): batch rows and length columns per grid step."""
    vmem = _vmem_capacity_bytes()
    # Per-buffer x tile budget: big tiles amortize the ~0.35us/step overhead and
    # keep the kernel at the HBM roofline, but stay well under the scoped VMEM
    # limit (v7x has only 64 MiB per TC; v5e/v6e have 128 MiB physical).
    per_buf = max(512 << 10, min(8 << 20, vmem // 16))

    row_bytes = C * L * itemsize
    if row_bytes > per_buf:
        # A single batch row over-fills the budget: tile the L reduction axis.
        tb = 8
        tl = max(128, ((per_buf // (tb * C * itemsize)) // 128) * 128)
        return tb, tl

    tb = max(8, ((per_buf // row_bytes) // 8) * 8)
    tb = min(tb, _round_up(B, 8))

    # Dual-TC parts (v7x / megacore): aim for >=4 grid steps (>=2 per core) so
    # the per-core BlockSpec double-buffer actually overlaps DMA with compute.
    if _num_tensorcores() > 1 and B > 8:
        tb = min(tb, max(8, _round_up(pl.cdiv(B, 4), 8)))

    return tb, L


# ---------------------------------------------------------------------------
# Wrapper
# ---------------------------------------------------------------------------
def channel_attention(x, w1, w2, *, tb=None, tl=None):
    """x: (B, C, L), w1: (C//16, C), w2: (C, C//16) -> (B, C, 1)."""
    B, C, L = x.shape
    hidden = w1.shape[0]
    itemsize = jnp.dtype(x.dtype).itemsize

    auto_tb, auto_tl = _pick_tiles(B, C, L, itemsize)
    tb = auto_tb if tb is None else tb
    tl = auto_tl if tl is None else tl

    # 8-aligned batch tile; pad batch to a multiple of it.
    tb = max(8, _round_up(tb, 8))
    b_pad = _round_up(B, tb)

    # Lane-aligned L tile (multiple of 128) or the full (untiled) length.
    if tl >= L:
        tl, l_pad = L, L
    else:
        tl = max(128, (tl // 128) * 128)
        if tl >= L:
            tl, l_pad = L, L
        else:
            l_pad = _round_up(L, tl)

    if (b_pad, l_pad) != (B, L):
        x = jnp.pad(x, ((0, b_pad - B), (0, 0), (0, l_pad - L)))

    grid = (b_pad // tb, l_pad // tl)

    kernel = functools.partial(_channel_attention_kernel,
                               true_l=L, l_tile=tl, l_is_padded=(l_pad != L))

    # HBM-bound on the pooling read; tell XLA so it overlaps neighbors.
    bytes_accessed = (b_pad * C * l_pad * itemsize
                      + w1.size * w1.dtype.itemsize
                      + w2.size * w2.dtype.itemsize
                      + b_pad * C * itemsize)
    flops = 2 * b_pad * C * l_pad + 2 * (2 * b_pad) * hidden * C * 2
    cost = pl.CostEstimate(flops=int(flops),
                           transcendentals=int(b_pad * C),
                           bytes_accessed=int(bytes_accessed))

    vmem_cap = _vmem_capacity_bytes()
    vmem_limit = int(max(32 << 20, min(48 << 20, int(0.6 * vmem_cap))))

    out = pl.pallas_call(
        kernel,
        out_shape=jax.ShapeDtypeStruct((b_pad, C), x.dtype),
        grid_spec=pltpu.PrefetchScalarGridSpec(
            num_scalar_prefetch=0,
            grid=grid,
            in_specs=[
                pl.BlockSpec((tb, C, tl), lambda b, l: (b, 0, l)),
                pl.BlockSpec((hidden, C), lambda b, l: (0, 0)),
                pl.BlockSpec((C, hidden), lambda b, l: (0, 0)),
            ],
            out_specs=pl.BlockSpec((tb, C), lambda b, l: (b, 0)),
            scratch_shapes=[pltpu.VMEM((tb, C), jnp.float32),   # running sum
                            pltpu.VMEM((tb, C), jnp.float32)],  # running max
        ),
        compiler_params=pltpu.CompilerParams(
            dimension_semantics=("parallel", "arbitrary"),
            vmem_limit_bytes=vmem_limit),
        cost_estimate=cost,
    )(x, w1, w2)

    return out[:B].reshape(B, C, 1)


# ---------------------------------------------------------------------------
# Pure-JAX reference (mirrors the PyTorch forward pass, bias=False)
# ---------------------------------------------------------------------------
def channel_attention_ref(x, w1, w2):
    avg = jnp.mean(x, axis=-1, keepdims=True)                 # (B, C, 1)
    mx = jnp.max(x, axis=-1, keepdims=True)                   # (B, C, 1)

    def mlp(p):
        h = jnp.einsum("hc,bcl->bhl", w1, p)
        h = jnp.maximum(h, 0.0)
        return jnp.einsum("ch,bhl->bcl", w2, h)

    return jax.nn.sigmoid(mlp(avg) + mlp(mx))


if __name__ == "__main__":
    B, C, L = 2, 64, 16            # in_planes=64 -> hidden = 64 // 16 = 4
    hidden = C // 16

    key = jax.random.PRNGKey(0)
    kx, k1, k2 = jax.random.split(key, 3)

    x = jax.random.normal(kx, (B, C, L), dtype=jnp.float32)
    # PyTorch Conv1d weights are (out, in, 1); kernel_size=1 so drop trailing dim.
    w1 = jax.random.normal(k1, (hidden, C), dtype=jnp.float32) * 0.1   # fc1
    w2 = jax.random.normal(k2, (C, hidden), dtype=jnp.float32) * 0.1   # fc2

    out = channel_attention(x, w1, w2)
    out = jax.block_until_ready(out)

    ref = channel_attention_ref(x, w1, w2)
    assert out.shape == (B, C, 1)
    assert jnp.allclose(out, ref, atol=1e-5, rtol=1e-5)

    print("KERNEL_OK")
</pallas_src>

<mosaic_0001>
module attributes {stable_mosaic.version = 11 : i64} {
  func.func @_channel_attention_kernel(%arg0: i32, %arg1: i32, %arg2: memref<8x64x16xf32, #tpu.memory_space<vmem>>, %arg3: memref<4x64xf32, #tpu.memory_space<vmem>>, %arg4: memref<64x4xf32, #tpu.memory_space<vmem>>, %arg5: memref<8x64xf32, #tpu.memory_space<vmem>>, %arg6: memref<8x64xf32, #tpu.memory_space<vmem>>, %arg7: memref<8x64xf32, #tpu.memory_space<vmem>>) attributes {dimension_semantics = [#tpu.dimension_semantics<parallel>, #tpu.dimension_semantics<arbitrary>], iteration_bounds = array<i64: 1, 1>, scalar_prefetch = 0 : i64, scratch_operands = 2 : i64, tpu.core_type = #tpu.core_type<tc>, window_params = [{transform_indices = @transform_0, window_bounds = array<i64: 8, 64, 16>}, {pipeline_mode = #tpu.pipeline_mode<synchronous>, transform_indices = @transform_1, window_bounds = array<i64: 4, 64>}, {pipeline_mode = #tpu.pipeline_mode<synchronous>, transform_indices = @transform_2, window_bounds = array<i64: 64, 4>}, {transform_indices = @transform_3, window_bounds = array<i64: 8, 64>}]} {
    %c0_i32 = arith.constant 0 : i32
    %0 = arith.cmpi eq, %arg1, %c0_i32 : i32
    %1 = arith.extui %0 : i1 to i32
    %c0_i32_0 = arith.constant 0 : i32
    %2 = arith.cmpi ne, %1, %c0_i32_0 : i32
    scf.if %2 {
      %cst_14 = arith.constant 0.000000e+00 : f32
      %15 = vector.broadcast %cst_14 : f32 to vector<8x64xf32>
      %c0_15 = arith.constant 0 : index
      %c0_16 = arith.constant 0 : index
      %16 = vector.load %arg6[%c0_15, %c0_16] : memref<8x64xf32, #tpu.memory_space<vmem>>, vector<8x64xf32>
      tpu.vector_store %arg6[%c0_15, %c0_16], %15 {strides = array<i32>} : memref<8x64xf32, #tpu.memory_space<vmem>>, vector<8x64xf32>,
      %cst_17 = arith.constant 0xFF800000 : f32
      %17 = vector.broadcast %cst_17 : f32 to vector<8x64xf32>
      %c0_18 = arith.constant 0 : index
      %c0_19 = arith.constant 0 : index
      %18 = vector.load %arg7[%c0_18, %c0_19] : memref<8x64xf32, #tpu.memory_space<vmem>>, vector<8x64xf32>
      tpu.vector_store %arg7[%c0_18, %c0_19], %17 {strides = array<i32>} : memref<8x64xf32, #tpu.memory_space<vmem>>, vector<8x64xf32>,
    } else {
    }
    %c0 = arith.constant 0 : index
    %c0_1 = arith.constant 0 : index
    %c0_2 = arith.constant 0 : index
    %3 = vector.load %arg2[%c0, %c0_1, %c0_2] : memref<8x64x16xf32, #tpu.memory_space<vmem>>, vector<8x64x16xf32>
    %c0_3 = arith.constant 0 : index
    %c0_4 = arith.constant 0 : index
    %4 = vector.load %arg6[%c0_3, %c0_4] : memref<8x64xf32, #tpu.memory_space<vmem>>, vector<8x64xf32>
    %cst = arith.constant dense<0.000000e+00> : vector<8x64xf32>
    %5 = vector.multi_reduction <add>, %3, %cst [2] : vector<8x64x16xf32> to vector<8x64xf32>
    %6 = arith.addf %4, %5 : vector<8x64xf32>
    %c0_5 = arith.constant 0 : index
    %c0_6 = arith.constant 0 : index
    %7 = vector.load %arg6[%c0_5, %c0_6] : memref<8x64xf32, #tpu.memory_space<vmem>>, vector<8x64xf32>
    tpu.vector_store %arg6[%c0_5, %c0_6], %6 {strides = array<i32>} : memref<8x64xf32, #tpu.memory_space<vmem>>, vector<8x64xf32>,
    %c0_7 = arith.constant 0 : index
    %c0_8 = arith.constant 0 : index
    %8 = vector.load %arg7[%c0_7, %c0_8] : memref<8x64xf32, #tpu.memory_space<vmem>>, vector<8x64xf32>
    %cst_9 = arith.constant dense<0xFF800000> : vector<8x64xf32>
    %9 = vector.multi_reduction <maximumf>, %3, %cst_9 [2] : vector<8x64x16xf32> to vector<8x64xf32>
    %10 = arith.maximumf %8, %9 : vector<8x64xf32>
    %c0_10 = arith.constant 0 : index
    %c0_11 = arith.constant 0 : index
    %11 = vector.load %arg7[%c0_10, %c0_11] : memref<8x64xf32, #tpu.memory_space<vmem>>, vector<8x64xf32>
    tpu.vector_store %arg7[%c0_10, %c0_11], %10 {strides = array<i32>} : memref<8x64xf32, #tpu.memory_space<vmem>>, vector<8x64xf32>,
    %c0_i32_12 = arith.constant 0 : i32
    %12 = arith.cmpi eq, %arg1, %c0_i32_12 : i32
    %13 = arith.extui %12 : i1 to i32
    %c0_i32_13 = arith.constant 0 : i32
    %14 = arith.cmpi ne, %13, %c0_i32_13 : i32
    scf.if %14 {
      %c0_14 = arith.constant 0 : index
      %c0_15 = arith.constant 0 : index
      %15 = vector.load %arg3[%c0_14, %c0_15] : memref<4x64xf32, #tpu.memory_space<vmem>>, vector<4x64xf32>
      %c0_16 = arith.constant 0 : index
      %c0_17 = arith.constant 0 : index
      %16 = vector.load %arg4[%c0_16, %c0_17] : memref<64x4xf32, #tpu.memory_space<vmem>>, vector<64x4xf32>
      %c0_18 = arith.constant 0 : index
      %c0_19 = arith.constant 0 : index
      %17 = vector.load %arg6[%c0_18, %c0_19] : memref<8x64xf32, #tpu.memory_space<vmem>>, vector<8x64xf32>
      %cst_20 = arith.constant 6.250000e-02 : f32
      %18 = vector.broadcast %cst_20 : f32 to vector<8x64xf32>
      %19 = arith.mulf %17, %18 : vector<8x64xf32>
      %c0_21 = arith.constant 0 : index
      %c0_22 = arith.constant 0 : index
      %20 = vector.load %arg7[%c0_21, %c0_22] : memref<8x64xf32, #tpu.memory_space<vmem>>, vector<8x64xf32>
      %21 = tpu.concatenate %19, %20 in 0 : vector<8x64xf32>, vector<8x64xf32> -> vector<16x64xf32>
      %cst_23 = arith.constant dense<0.000000e+00> : vector<16x4xf32>
      %22 = tpu.matmul %21, %15, %cst_23 {dimension_numbers = #tpu.dot_dimension_numbers<[1], [1], [0], [0], [0, 0, 1, 0], [], []>} : vector<16x64xf32>, vector<4x64xf32>, vector<16x4xf32> -> vector<16x4xf32>
      %cst_24 = arith.constant 0.000000e+00 : f32
      %23 = vector.broadcast %cst_24 : f32 to vector<16x4xf32>
      %24 = arith.maximumf %22, %23 : vector<16x4xf32>
      %cst_25 = arith.constant dense<0.000000e+00> : vector<16x64xf32>
      %25 = tpu.matmul %24, %16, %cst_25 {dimension_numbers = #tpu.dot_dimension_numbers<[1], [1], [0], [0], [0, 0, 1, 0], [], []>} : vector<16x4xf32>, vector<64x4xf32>, vector<16x64xf32> -> vector<16x64xf32>
      %26 = vector.extract_strided_slice %25 {offsets = [0, 0], sizes = [8, 64], strides = [1, 1]} : vector<16x64xf32> to vector<8x64xf32>
      %27 = vector.extract_strided_slice %25 {offsets = [8, 0], sizes = [8, 64], strides = [1, 1]} : vector<16x64xf32> to vector<8x64xf32>
      %28 = arith.addf %26, %27 : vector<8x64xf32>
      %29 = arith.negf %28 : vector<8x64xf32>
      %30 = math.exp %29 : vector<8x64xf32>
      %cst_26 = arith.constant 1.000000e+00 : f32
      %31 = vector.broadcast %cst_26 : f32 to vector<8x64xf32>
      %32 = arith.addf %31, %30 : vector<8x64xf32>
      %33 = arith.divf %31, %32 : vector<8x64xf32>
      %c0_27 = arith.constant 0 : index
      %c0_28 = arith.constant 0 : index
      %34 = vector.load %arg5[%c0_27, %c0_28] : memref<8x64xf32, #tpu.memory_space<vmem>>, vector<8x64xf32>
      tpu.vector_store %arg5[%c0_27, %c0_28], %33 {strides = array<i32>} : memref<8x64xf32, #tpu.memory_space<vmem>>, vector<8x64xf32>,
    } else {
    }
    return
  }
  func.func @transform_0(%arg0: i32, %arg1: i32) -> (i32, i32, i32) {
    %c0_i32 = arith.constant 0 : i32
    %c0_i32_0 = arith.constant 0 : i32
    return %arg0, %c0_i32, %arg1 : i32, i32, i32
  }
  func.func @transform_1(%arg0: i32, %arg1: i32) -> (i32, i32) {
    %c0_i32 = arith.constant 0 : i32
    %c0_i32_0 = arith.constant 0 : i32
    %c0_i32_1 = arith.constant 0 : i32
    return %c0_i32, %c0_i32_0 : i32, i32
  }
  func.func @transform_2(%arg0: i32, %arg1: i32) -> (i32, i32) {
    %c0_i32 = arith.constant 0 : i32
    %c0_i32_0 = arith.constant 0 : i32
    %c0_i32_1 = arith.constant 0 : i32
    return %c0_i32, %c0_i32_0 : i32, i32
  }
  func.func @transform_3(%arg0: i32, %arg1: i32) -> (i32, i32) {
    %c0_i32 = arith.constant 0 : i32
    %c0_i32_0 = arith.constant 0 : i32
    return %arg0, %c0_i32 : i32, i32
  }
}

</mosaic_0001>

<llo_original>
// kernel: tpu_custom_call.1
$region0: #{tpu_custom_call.1}
  #allocation0 [shape = 'u32[]', space=smem, size = 0x4, offset = 0x4, fixed_abs, tag = 'smem constant byte address 0x4 - core index']
  #allocation1 [shape = 'u32[144,128]{1,0:T(1,128)}', space=vmem, size = 0x12000, scoped, tag = 'internal scratch']
  #allocation2 [shape = 'f32[8,64]{1,0:T(8,128)}', space=vmem, size = 0x1000, scoped, tag = 'scratch operand']
  #allocation3 [shape = 'f32[8,64]{1,0:T(8,128)}', space=vmem, size = 0x1000, scoped, tag = 'scratch operand']
  %s0 = inlined_call_operand.vmem [shape: f32[8,64,16], index: 0, kind: input, shape index: {}]
  %s1 = inlined_call_operand.vmem [shape: f32[4,64], index: 1, kind: input, shape index: {}]
  %s2 = inlined_call_operand.vmem [shape: f32[64,4], index: 2, kind: input, shape index: {}]
  %s3 = inlined_call_operand.hbm [shape: f32[8,64], index: 3, kind: output, shape index: {}]
  %s4 = sld [smem:[#allocation0]]
  $region30: #{tpu_custom_call.1} parent=0
    _
  %s6 = ssub.s32 1, %s4
  %s7 = scalar_select 0, %s6, %s4
  $region1: #{tpu_custom_call.1} parent=0
    #allocation4 [shape = 'u8[4096]{0}', space=vmem, size = 0x1000, scoped, tag = 'output window, operand 0, single buffered']
    #allocation5 [shape = 's32[1]{0}', space=sflag, size = 0x4, scoped, tag = 'scoped memory for tpu_custom_call.1']
    %8 = vsyncpa [#allocation5], 0
    // Predicated region
    $region2: #{tpu_custom_call.1} parent=1 // pred_check
      _
    $region3: #{tpu_custom_call.1} parent=1 // pred_check_branch
      %10 = sbr.rel (0) target = $region5
    $region4: #{tpu_custom_call.1} parent=1 // pred_region
      _
    $region5: #{tpu_custom_call.1} parent=1 // pred_fallthru
      _
    // Predicated region
    $region6: #{tpu_custom_call.1} parent=1 // pred_check
      _
    $region7: #{tpu_custom_call.1} parent=1 // pred_check_branch
      %12 = sbr.rel (0) target = $region9
    $region8: #{tpu_custom_call.1} parent=1 // pred_region
      _
    $region9: #{tpu_custom_call.1} parent=1 // pred_fallthru
      _
    // Predicated region
    $region10: #{tpu_custom_call.1} parent=1 // pred_check
      _
    $region11: #{tpu_custom_call.1} parent=1 // pred_check_branch
      %14 = sbr.rel (0) target = $region13
    $region12: #{tpu_custom_call.1} parent=1 // pred_region
      _
    $region13: #{tpu_custom_call.1} parent=1 // pred_fallthru
      _
    %p15 = scmp.eq.s32.totalorder 0, 0
    // Predicated region
    $region14: #{tpu_custom_call.1} parent=1 // pred_check
      %p16 = pneg %p15
    $region15: #{tpu_custom_call.1} parent=1 // pred_check_branch
      %18 = sbr.rel (%p16) target = $region17
    $region16: #{tpu_custom_call.1} parent=1 // pred_region
      %vm19 = vcmask 523264
      %20 = vst.msk [vmem:[#allocation2] sm:$0xff] %vm19, 0.0
      %21 = vst.msk [vmem:[#allocation3] sm:$0xff] %vm19, -inf
    $region17: #{tpu_custom_call.1} parent=1 // pred_fallthru
      _
    %v22 = vld [vmem:[%s0] sm:$0xff]
    %v23 = vld [vmem:[%s0 + $0x8] sm:$0xff]
    %v24 = vld [vmem:[%s0 + $0x10] sm:$0xff]
    %v25 = vld [vmem:[%s0 + $0x18] sm:$0xff]
    %v26 = vld [vmem:[%s0 + $0x20] sm:$0xff]
    %v27 = vld [vmem:[%s0 + $0x28] sm:$0xff]
    %v28 = vld [vmem:[%s0 + $0x30] sm:$0xff]
    %v29 = vld [vmem:[%s0 + $0x38] sm:$0xff]
    %v30 = vld [vmem:[%s0 + $0x40] sm:$0xff]
    %v31 = vld [vmem:[%s0 + $0x48] sm:$0xff]
    %v32 = vld [vmem:[%s0 + $0x50] sm:$0xff]
    %v33 = vld [vmem:[%s0 + $0x58] sm:$0xff]
    %v34 = vld [vmem:[%s0 + $0x60] sm:$0xff]
    %v35 = vld [vmem:[%s0 + $0x68] sm:$0xff]
    %v36 = vld [vmem:[%s0 + $0x70] sm:$0xff]
    %v37 = vld [vmem:[%s0 + $0x78] sm:$0xff]
    %v38 = vld [vmem:[%s0 + $0x80] sm:$0xff]
    %v39 = vld [vmem:[%s0 + $0x88] sm:$0xff]
    %v40 = vld [vmem:[%s0 + $0x90] sm:$0xff]
    %v41 = vld [vmem:[%s0 + $0x98] sm:$0xff]
    %v42 = vld [vmem:[%s0 + $0xa0] sm:$0xff]
    %v43 = vld [vmem:[%s0 + $0xa8] sm:$0xff]
    %v44 = vld [vmem:[%s0 + $0xb0] sm:$0xff]
    %v45 = vld [vmem:[%s0 + $0xb8] sm:$0xff]
    %v46 = vld [vmem:[%s0 + $0xc0] sm:$0xff]
    %v47 = vld [vmem:[%s0 + $0xc8] sm:$0xff]
    %v48 = vld [vmem:[%s0 + $0xd0] sm:$0xff]
    %v49 = vld [vmem:[%s0 + $0xd8] sm:$0xff]
    %v50 = vld [vmem:[%s0 + $0xe0] sm:$0xff]
    %v51 = vld [vmem:[%s0 + $0xe8] sm:$0xff]
    %v52 = vld [vmem:[%s0 + $0xf0] sm:$0xff]
    %v53 = vld [vmem:[%s0 + $0xf8] sm:$0xff]
    %v54 = vld [vmem:[%s0 + $0x100] sm:$0xff]
    %v55 = vld [vmem:[%s0 + $0x108] sm:$0xff]
    %v56 = vld [vmem:[%s0 + $0x110] sm:$0xff]
    %v57 = vld [vmem:[%s0 + $0x118] sm:$0xff]
    %v58 = vld [vmem:[%s0 + $0x120] sm:$0xff]
    %v59 = vld [vmem:[%s0 + $0x128] sm:$0xff]
    %v60 = vld [vmem:[%s0 + $0x130] sm:$0xff]
    %v61 = vld [vmem:[%s0 + $0x138] sm:$0xff]
    %v62 = vld [vmem:[%s0 + $0x140] sm:$0xff]
    %v63 = vld [vmem:[%s0 + $0x148] sm:$0xff]
    %v64 = vld [vmem:[%s0 + $0x150] sm:$0xff]
    %v65 = vld [vmem:[%s0 + $0x158] sm:$0xff]
    %v66 = vld [vmem:[%s0 + $0x160] sm:$0xff]
    %v67 = vld [vmem:[%s0 + $0x168] sm:$0xff]
    %v68 = vld [vmem:[%s0 + $0x170] sm:$0xff]
    %v69 = vld [vmem:[%s0 + $0x178] sm:$0xff]
    %v70 = vld [vmem:[%s0 + $0x180] sm:$0xff]
    %v71 = vld [vmem:[%s0 + $0x188] sm:$0xff]
    %v72 = vld [vmem:[%s0 + $0x190] sm:$0xff]
    %v73 = vld [vmem:[%s0 + $0x198] sm:$0xff]
    %v74 = vld [vmem:[%s0 + $0x1a0] sm:$0xff]
    %v75 = vld [vmem:[%s0 + $0x1a8] sm:$0xff]
    %v76 = vld [vmem:[%s0 + $0x1b0] sm:$0xff]
    %v77 = vld [vmem:[%s0 + $0x1b8] sm:$0xff]
    %v78 = vld [vmem:[%s0 + $0x1c0] sm:$0xff]
    %v79 = vld [vmem:[%s0 + $0x1c8] sm:$0xff]
    %v80 = vld [vmem:[%s0 + $0x1d0] sm:$0xff]
    %v81 = vld [vmem:[%s0 + $0x1d8] sm:$0xff]
    %v82 = vld [vmem:[%s0 + $0x1e0] sm:$0xff]
    %v83 = vld [vmem:[%s0 + $0x1e8] sm:$0xff]
    %v84 = vld [vmem:[%s0 + $0x1f0] sm:$0xff]
    %v85 = vld [vmem:[%s0 + $0x1f8] sm:$0xff]
    %v86 = vld [vmem:[#allocation2] sm:$0xff]
    %vm87 = vcmask 130048
    %v88 = vsel %vm87, %v22, 0.0
    %89 = vadd.xlane.f32.xlu0 %v88
    %v90 = vpop.xlane.xlu0 %89
    %v91 = vsel %vm87, %v23, 0.0
    %92 = vadd.xlane.f32.xlu0 %v91
    %v93 = vpop.xlane.xlu0 %92
    %v94 = vsel %vm87, %v24, 0.0
    %95 = vadd.xlane.f32.xlu0 %v94
    %v96 = vpop.xlane.xlu0 %95
    %v97 = vsel %vm87, %v25, 0.0
    %98 = vadd.xlane.f32.xlu0 %v97
    %v99 = vpop.xlane.xlu0 %98
    %v100 = vsel %vm87, %v26, 0.0
    %101 = vadd.xlane.f32.xlu0 %v100
    %v102 = vpop.xlane.xlu0 %101
    %v103 = vsel %vm87, %v27, 0.0
    %104 = vadd.xlane.f32.xlu0 %v103
    %v105 = vpop.xlane.xlu0 %104
    %v106 = vsel %vm87, %v28, 0.0
    %107 = vadd.xlane.f32.xlu0 %v106
    %v108 = vpop.xlane.xlu0 %107
    %v109 = vsel %vm87, %v29, 0.0
    %110 = vadd.xlane.f32.xlu0 %v109
    %v111 = vpop.xlane.xlu0 %110
    %v112 = vsel %vm87, %v30, 0.0
    %113 = vadd.xlane.f32.xlu0 %v112
    %v114 = vpop.xlane.xlu0 %113
    %v115 = vsel %vm87, %v31, 0.0
    %116 = vadd.xlane.f32.xlu0 %v115
    %v117 = vpop.xlane.xlu0 %116
    %v118 = vsel %vm87, %v32, 0.0
    %119 = vadd.xlane.f32.xlu0 %v118
    %v120 = vpop.xlane.xlu0 %119
    %v121 = vsel %vm87, %v33, 0.0
    %122 = vadd.xlane.f32.xlu0 %v121
    %v123 = vpop.xlane.xlu0 %122
    %v124 = vsel %vm87, %v34, 0.0
    %125 = vadd.xlane.f32.xlu0 %v124
    %v126 = vpop.xlane.xlu0 %125
    %v127 = vsel %vm87, %v35, 0.0
    %128 = vadd.xlane.f32.xlu0 %v127
    %v129 = vpop.xlane.xlu0 %128
    %v130 = vsel %vm87, %v36, 0.0
    %131 = vadd.xlane.f32.xlu0 %v130
    %v132 = vpop.xlane.xlu0 %131
    %v133 = vsel %vm87, %v37, 0.0
    %134 = vadd.xlane.f32.xlu0 %v133
    %v135 = vpop.xlane.xlu0 %134
    %v136 = vsel %vm87, %v38, 0.0
    %137 = vadd.xlane.f32.xlu0 %v136
    %v138 = vpop.xlane.xlu0 %137
    %v139 = vsel %vm87, %v39, 0.0
    %140 = vadd.xlane.f32.xlu0 %v139
    %v141 = vpop.xlane.xlu0 %140
    %v142 = vsel %vm87, %v40, 0.0
    %143 = vadd.xlane.f32.xlu0 %v142
    %v144 = vpop.xlane.xlu0 %143
    %v145 = vsel %vm87, %v41, 0.0
    %146 = vadd.xlane.f32.xlu0 %v145
    %v147 = vpop.xlane.xlu0 %146
    %v148 = vsel %vm87, %v42, 0.0
    %149 = vadd.xlane.f32.xlu0 %v148
    %v150 = vpop.xlane.xlu0 %149
    %v151 = vsel %vm87, %v43, 0.0
    %152 = vadd.xlane.f32.xlu0 %v151
    %v153 = vpop.xlane.xlu0 %152
    %v154 = vsel %vm87, %v44, 0.0
    %155 = vadd.xlane.f32.xlu0 %v154
    %v156 = vpop.xlane.xlu0 %155
    %v157 = vsel %vm87, %v45, 0.0
    %158 = vadd.xlane.f32.xlu0 %v157
    %v159 = vpop.xlane.xlu0 %158
    %v160 = vsel %vm87, %v46, 0.0
    %161 = vadd.xlane.f32.xlu0 %v160
    %v162 = vpop.xlane.xlu0 %161
    %v163 = vsel %vm87, %v47, 0.0
    %164 = vadd.xlane.f32.xlu0 %v163
    %v165 = vpop.xlane.xlu0 %164
    %v166 = vsel %vm87, %v48, 0.0
    %167 = vadd.xlane.f32.xlu0 %v166
    %v168 = vpop.xlane.xlu0 %167
    %v169 = vsel %vm87, %v49, 0.0
    %170 = vadd.xlane.f32.xlu0 %v169
    %v171 = vpop.xlane.xlu0 %170
    %v172 = vsel %vm87, %v50, 0.0
    %173 = vadd.xlane.f32.xlu0 %v172
    %v174 = vpop.xlane.xlu0 %173
    %v175 = vsel %vm87, %v51, 0.0
    %176 = vadd.xlane.f32.xlu0 %v175
    %v177 = vpop.xlane.xlu0 %176
    %v178 = vsel %vm87, %v52, 0.0
    %179 = vadd.xlane.f32.xlu0 %v178
    %v180 = vpop.xlane.xlu0 %179
    %v181 = vsel %vm87, %v53, 0.0
    %182 = vadd.xlane.f32.xlu0 %v181
    %v183 = vpop.xlane.xlu0 %182
    %v184 = vsel %vm87, %v54, 0.0
    %185 = vadd.xlane.f32.xlu0 %v184
    %v186 = vpop.xlane.xlu0 %185
    %v187 = vsel %vm87, %v55, 0.0
    %188 = vadd.xlane.f32.xlu0 %v187
    %v189 = vpop.xlane.xlu0 %188
    %v190 = vsel %vm87, %v56, 0.0
    %191 = vadd.xlane.f32.xlu0 %v190
    %v192 = vpop.xlane.xlu0 %191
    %v193 = vsel %vm87, %v57, 0.0
    %194 = vadd.xlane.f32.xlu0 %v193
    %v195 = vpop.xlane.xlu0 %194
    %v196 = vsel %vm87, %v58, 0.0
    %197 = vadd.xlane.f32.xlu0 %v196
    %v198 = vpop.xlane.xlu0 %197
    %v199 = vsel %vm87, %v59, 0.0
    %200 = vadd.xlane.f32.xlu0 %v199
    %v201 = vpop.xlane.xlu0 %200
    %v202 = vsel %vm87, %v60, 0.0
    %203 = vadd.xlane.f32.xlu0 %v202
    %v204 = vpop.xlane.xlu0 %203
    %v205 = vsel %vm87, %v61, 0.0
    %206 = vadd.xlane.f32.xlu0 %v205
    %v207 = vpop.xlane.xlu0 %206
    %v208 = vsel %vm87, %v62, 0.0
    %209 = vadd.xlane.f32.xlu0 %v208
    %v210 = vpop.xlane.xlu0 %209
    %v211 = vsel %vm87, %v63, 0.0
    %212 = vadd.xlane.f32.xlu0 %v211
    %v213 = vpop.xlane.xlu0 %212
    %v214 = vsel %vm87, %v64, 0.0
    %215 = vadd.xlane.f32.xlu0 %v214
    %v216 = vpop.xlane.xlu0 %215
    %v217 = vsel %vm87, %v65, 0.0
    %218 = vadd.xlane.f32.xlu0 %v217
    %v219 = vpop.xlane.xlu0 %218
    %v220 = vsel %vm87, %v66, 0.0
    %221 = vadd.xlane.f32.xlu0 %v220
    %v222 = vpop.xlane.xlu0 %221
    %v223 = vsel %vm87, %v67, 0.0
    %224 = vadd.xlane.f32.xlu0 %v223
    %v225 = vpop.xlane.xlu0 %224
    %v226 = vsel %vm87, %v68, 0.0
    %227 = vadd.xlane.f32.xlu0 %v226
    %v228 = vpop.xlane.xlu0 %227
    %v229 = vsel %vm87, %v69, 0.0
    %230 = vadd.xlane.f32.xlu0 %v229
    %v231 = vpop.xlane.xlu0 %230
    %v232 = vsel %vm87, %v70, 0.0
    %233 = vadd.xlane.f32.xlu0 %v232
    %v234 = vpop.xlane.xlu0 %233
    %v235 = vsel %vm87, %v71, 0.0
    %236 = vadd.xlane.f32.xlu0 %v235
    %v237 = vpop.xlane.xlu0 %236
    %v238 = vsel %vm87, %v72, 0.0
    %239 = vadd.xlane.f32.xlu0 %v238
    %v240 = vpop.xlane.xlu0 %239
    %v241 = vsel %vm87, %v73, 0.0
    %242 = vadd.xlane.f32.xlu0 %v241
    %v243 = vpop.xlane.xlu0 %242
    %v244 = vsel %vm87, %v74, 0.0
    %245 = vadd.xlane.f32.xlu0 %v244
    %v246 = vpop.xlane.xlu0 %245
    %v247 = vsel %vm87, %v75, 0.0
    %248 = vadd.xlane.f32.xlu0 %v247
    %v249 = vpop.xlane.xlu0 %248
    %v250 = vsel %vm87, %v76, 0.0
    %251 = vadd.xlane.f32.xlu0 %v250
    %v252 = vpop.xlane.xlu0 %251
    %v253 = vsel %vm87, %v77, 0.0
    %254 = vadd.xlane.f32.xlu0 %v253
    %v255 = vpop.xlane.xlu0 %254
    %v256 = vsel %vm87, %v78, 0.0
    %257 = vadd.xlane.f32.xlu0 %v256
    %v258 = vpop.xlane.xlu0 %257
    %v259 = vsel %vm87, %v79, 0.0
    %260 = vadd.xlane.f32.xlu0 %v259
    %v261 = vpop.xlane.xlu0 %260
    %v262 = vsel %vm87, %v80, 0.0
    %263 = vadd.xlane.f32.xlu0 %v262
    %v264 = vpop.xlane.xlu0 %263
    %v265 = vsel %vm87, %v81, 0.0
    %266 = vadd.xlane.f32.xlu0 %v265
    %v267 = vpop.xlane.xlu0 %266
    %v268 = vsel %vm87, %v82, 0.0
    %269 = vadd.xlane.f32.xlu0 %v268
    %v270 = vpop.xlane.xlu0 %269
    %v271 = vsel %vm87, %v83, 0.0
    %272 = vadd.xlane.f32.xlu0 %v271
    %v273 = vpop.xlane.xlu0 %272
    %v274 = vsel %vm87, %v84, 0.0
    %275 = vadd.xlane.f32.xlu0 %v274
    %v276 = vpop.xlane.xlu0 %275
    %v277 = vsel %vm87, %v85, 0.0
    %278 = vadd.xlane.f32.xlu0 %v277
    %v279 = vpop.xlane.xlu0 %278
    %v344 = vlaneseq
    %v345 = vand.u32 %v344, 127
    %v346 = vlaneseq
    %v347 = vshrl.u32 %v346, 7
    %v348 = vsub.s32 %v345, %v347
    %v349 = vrot.slane %v90, %v348
    %v350 = vadd.s32 %v345, 4294967288
    %v351 = vlaneseq
    %v352 = vshrl.u32 %v351, 7
    %v353 = vsub.s32 %v350, %v352
    %v354 = vrot.slane %v93, %v353
    %vm355 = vcmask 130112
    %v356 = vsel %vm355, %v354, %v349
    %v357 = vadd.s32 %v345, 4294967280
    %v358 = vlaneseq
    %v359 = vshrl.u32 %v358, 7
    %v360 = vsub.s32 %v357, %v359
    %v361 = vrot.slane %v96, %v360
    %vm362 = vcmask 195712
    %v363 = vsel %vm362, %v361, %v356
    %v364 = vadd.s32 %v345, 4294967272
    %v365 = vlaneseq
    %v366 = vshrl.u32 %v365, 7
    %v367 = vsub.s32 %v364, %v366
    %v368 = vrot.slane %v99, %v367
    %vm369 = vcmask 261312
    %v370 = vsel %vm369, %v368, %v363
    %v371 = vadd.s32 %v345, 4294967264
    %v372 = vlaneseq
    %v373 = vshrl.u32 %v372, 7
    %v374 = vsub.s32 %v371, %v373
    %v375 = vrot.slane %v102, %v374
    %vm376 = vcmask 326912
    %v377 = vsel %vm376, %v375, %v370
    %v378 = vadd.s32 %v345, 4294967256
    %v379 = vlaneseq
    %v380 = vshrl.u32 %v379, 7
    %v381 = vsub.s32 %v378, %v380
    %v382 = vrot.slane %v105, %v381
    %vm383 = vcmask 392512
    %v384 = vsel %vm383, %v382, %v377
    %v385 = vadd.s32 %v345, 4294967248
    %v386 = vlaneseq
    %v387 = vshrl.u32 %v386, 7
    %v388 = vsub.s32 %v385, %v387
    %v389 = vrot.slane %v108, %v388
    %vm390 = vcmask 458112
    %v391 = vsel %vm390, %v389, %v384
    %v392 = vadd.s32 %v345, 4294967240
    %v393 = vlaneseq
    %v394 = vshrl.u32 %v393, 7
    %v395 = vsub.s32 %v392, %v394
    %v396 = vrot.slane %v111, %v395
    %vm397 = vcmask 523712
    %v398 = vsel %vm397, %v396, %v391
    %v399 = vlaneseq
    %v400 = vshrl.u32 %v399, 7
    %v401 = vsub.s32 %v345, %v400
    %v402 = vrot.slane %v114, %v401
    %v403 = vlaneseq
    %v404 = vshrl.u32 %v403, 7
    %v405 = vsub.s32 %v350, %v404
    %v406 = vrot.slane %v117, %v405
    %v407 = vsel %vm355, %v406, %v402
    %v408 = vlaneseq
    %v409 = vshrl.u32 %v408, 7
    %v410 = vsub.s32 %v357, %v409
    %v411 = vrot.slane %v120, %v410
    %v412 = vsel %vm362, %v411, %v407
    %v413 = vlaneseq
    %v414 = vshrl.u32 %v413, 7
    %v415 = vsub.s32 %v364, %v414
    %v416 = vrot.slane %v123, %v415
    %v417 = vsel %vm369, %v416, %v412
    %v418 = vlaneseq
    %v419 = vshrl.u32 %v418, 7
    %v420 = vsub.s32 %v371, %v419
    %v421 = vrot.slane %v126, %v420
    %v422 = vsel %vm376, %v421, %v417
    %v423 = vlaneseq
    %v424 = vshrl.u32 %v423, 7
    %v425 = vsub.s32 %v378, %v424
    %v426 = vrot.slane %v129, %v425
    %v427 = vsel %vm383, %v426, %v422
    %v428 = vlaneseq
    %v429 = vshrl.u32 %v428, 7
    %v430 = vsub.s32 %v385, %v429
    %v431 = vrot.slane %v132, %v430
    %v432 = vsel %vm390, %v431, %v427
    %v433 = vlaneseq
    %v434 = vshrl.u32 %v433, 7
    %v435 = vsub.s32 %v392, %v434
    %v436 = vrot.slane %v135, %v435
    %v437 = vsel %vm397, %v436, %v432
    %v438 = vlaneseq
    %v439 = vshrl.u32 %v438, 7
    %v440 = vsub.s32 %v345, %v439
    %v441 = vrot.slane %v138, %v440
    %v442 = vlaneseq
    %v443 = vshrl.u32 %v442, 7
    %v444 = vsub.s32 %v350, %v443
    %v445 = vrot.slane %v141, %v444
    %v446 = vsel %vm355, %v445, %v441
    %v447 = vlaneseq
    %v448 = vshrl.u32 %v447, 7
    %v449 = vsub.s32 %v357, %v448
    %v450 = vrot.slane %v144, %v449
    %v451 = vsel %vm362, %v450, %v446
    %v452 = vlaneseq
    %v453 = vshrl.u32 %v452, 7
    %v454 = vsub.s32 %v364, %v453
    %v455 = vrot.slane %v147, %v454
    %v456 = vsel %vm369, %v455, %v451
    %v457 = vlaneseq
    %v458 = vshrl.u32 %v457, 7
    %v459 = vsub.s32 %v371, %v458
    %v460 = vrot.slane %v150, %v459
    %v461 = vsel %vm376, %v460, %v456
    %v462 = vlaneseq
    %v463 = vshrl.u32 %v462, 7
    %v464 = vsub.s32 %v378, %v463
    %v465 = vrot.slane %v153, %v464
    %v466 = vsel %vm383, %v465, %v461
    %v467 = vlaneseq
    %v468 = vshrl.u32 %v467, 7
    %v469 = vsub.s32 %v385, %v468
    %v470 = vrot.slane %v156, %v469
    %v471 = vsel %vm390, %v470, %v466
    %v472 = vlaneseq
    %v473 = vshrl.u32 %v472, 7
    %v474 = vsub.s32 %v392, %v473
    %v475 = vrot.slane %v159, %v474
    %v476 = vsel %vm397, %v475, %v471
    %v477 = vlaneseq
    %v478 = vshrl.u32 %v477, 7
    %v479 = vsub.s32 %v345, %v478
    %v480 = vrot.slane %v162, %v479
    %v481 = vlaneseq
    %v482 = vshrl.u32 %v481, 7
    %v483 = vsub.s32 %v350, %v482
    %v484 = vrot.slane %v165, %v483
    %v485 = vsel %vm355, %v484, %v480
    %v486 = vlaneseq
    %v487 = vshrl.u32 %v486, 7
    %v488 = vsub.s32 %v357, %v487
    %v489 = vrot.slane %v168, %v488
    %v490 = vsel %vm362, %v489, %v485
    %v491 = vlaneseq
    %v492 = vshrl.u32 %v491, 7
    %v493 = vsub.s32 %v364, %v492
    %v494 = vrot.slane %v171, %v493
    %v495 = vsel %vm369, %v494, %v490
    %v496 = vlaneseq
    %v497 = vshrl.u32 %v496, 7
    %v498 = vsub.s32 %v371, %v497
    %v499 = vrot.slane %v174, %v498
    %v500 = vsel %vm376, %v499, %v495
    %v501 = vlaneseq
    %v502 = vshrl.u32 %v501, 7
    %v503 = vsub.s32 %v378, %v502
    %v504 = vrot.slane %v177, %v503
    %v505 = vsel %vm383, %v504, %v500
    %v506 = vlaneseq
    %v507 = vshrl.u32 %v506, 7
    %v508 = vsub.s32 %v385, %v507
    %v509 = vrot.slane %v180, %v508
    %v510 = vsel %vm390, %v509, %v505
    %v511 = vlaneseq
    %v512 = vshrl.u32 %v511, 7
    %v513 = vsub.s32 %v392, %v512
    %v514 = vrot.slane %v183, %v513
    %v515 = vsel %vm397, %v514, %v510
    %v516 = vlaneseq
    %v517 = vshrl.u32 %v516, 7
    %v518 = vsub.s32 %v345, %v517
    %v519 = vrot.slane %v186, %v518
    %v520 = vlaneseq
    %v521 = vshrl.u32 %v520, 7
    %v522 = vsub.s32 %v350, %v521
    %v523 = vrot.slane %v189, %v522
    %v524 = vsel %vm355, %v523, %v519
    %v525 = vlaneseq
    %v526 = vshrl.u32 %v525, 7
    %v527 = vsub.s32 %v357, %v526
    %v528 = vrot.slane %v192, %v527
    %v529 = vsel %vm362, %v528, %v524
    %v530 = vlaneseq
    %v531 = vshrl.u32 %v530, 7
    %v532 = vsub.s32 %v364, %v531
    %v533 = vrot.slane %v195, %v532
    %v534 = vsel %vm369, %v533, %v529
    %v535 = vlaneseq
    %v536 = vshrl.u32 %v535, 7
    %v537 = vsub.s32 %v371, %v536
    %v538 = vrot.slane %v198, %v537
    %v539 = vsel %vm376, %v538, %v534
    %v540 = vlaneseq
    %v541 = vshrl.u32 %v540, 7
    %v542 = vsub.s32 %v378, %v541
    %v543 = vrot.slane %v201, %v542
    %v544 = vsel %vm383, %v543, %v539
    %v545 = vlaneseq
    %v546 = vshrl.u32 %v545, 7
    %v547 = vsub.s32 %v385, %v546
    %v548 = vrot.slane %v204, %v547
    %v549 = vsel %vm390, %v548, %v544
    %v550 = vlaneseq
    %v551 = vshrl.u32 %v550, 7
    %v552 = vsub.s32 %v392, %v551
    %v553 = vrot.slane %v207, %v552
    %v554 = vsel %vm397, %v553, %v549
    %v555 = vlaneseq
    %v556 = vshrl.u32 %v555, 7
    %v557 = vsub.s32 %v345, %v556
    %v558 = vrot.slane %v210, %v557
    %v559 = vlaneseq
    %v560 = vshrl.u32 %v559, 7
    %v561 = vsub.s32 %v350, %v560
    %v562 = vrot.slane %v213, %v561
    %v563 = vsel %vm355, %v562, %v558
    %v564 = vlaneseq
    %v565 = vshrl.u32 %v564, 7
    %v566 = vsub.s32 %v357, %v565
    %v567 = vrot.slane %v216, %v566
    %v568 = vsel %vm362, %v567, %v563
    %v569 = vlaneseq
    %v570 = vshrl.u32 %v569, 7
    %v571 = vsub.s32 %v364, %v570
    %v572 = vrot.slane %v219, %v571
    %v573 = vsel %vm369, %v572, %v568
    %v574 = vlaneseq
    %v575 = vshrl.u32 %v574, 7
    %v576 = vsub.s32 %v371, %v575
    %v577 = vrot.slane %v222, %v576
    %v578 = vsel %vm376, %v577, %v573
    %v579 = vlaneseq
    %v580 = vshrl.u32 %v579, 7
    %v581 = vsub.s32 %v378, %v580
    %v582 = vrot.slane %v225, %v581
    %v583 = vsel %vm383, %v582, %v578
    %v584 = vlaneseq
    %v585 = vshrl.u32 %v584, 7
    %v586 = vsub.s32 %v385, %v585
    %v587 = vrot.slane %v228, %v586
    %v588 = vsel %vm390, %v587, %v583
    %v589 = vlaneseq
    %v590 = vshrl.u32 %v589, 7
    %v591 = vsub.s32 %v392, %v590
    %v592 = vrot.slane %v231, %v591
    %v593 = vsel %vm397, %v592, %v588
    %v594 = vlaneseq
    %v595 = vshrl.u32 %v594, 7
    %v596 = vsub.s32 %v345, %v595
    %v597 = vrot.slane %v234, %v596
    %v598 = vlaneseq
    %v599 = vshrl.u32 %v598, 7
    %v600 = vsub.s32 %v350, %v599
    %v601 = vrot.slane %v237, %v600
    %v602 = vsel %vm355, %v601, %v597
    %v603 = vlaneseq
    %v604 = vshrl.u32 %v603, 7
    %v605 = vsub.s32 %v357, %v604
    %v606 = vrot.slane %v240, %v605
    %v607 = vsel %vm362, %v606, %v602
    %v608 = vlaneseq
    %v609 = vshrl.u32 %v608, 7
    %v610 = vsub.s32 %v364, %v609
    %v611 = vrot.slane %v243, %v610
    %v612 = vsel %vm369, %v611, %v607
    %v613 = vlaneseq
    %v614 = vshrl.u32 %v613, 7
    %v615 = vsub.s32 %v371, %v614
    %v616 = vrot.slane %v246, %v615
    %v617 = vsel %vm376, %v616, %v612
    %v618 = vlaneseq
    %v619 = vshrl.u32 %v618, 7
    %v620 = vsub.s32 %v378, %v619
    %v621 = vrot.slane %v249, %v620
    %v622 = vsel %vm383, %v621, %v617
    %v623 = vlaneseq
    %v624 = vshrl.u32 %v623, 7
    %v625 = vsub.s32 %v385, %v624
    %v626 = vrot.slane %v252, %v625
    %v627 = vsel %vm390, %v626, %v622
    %v628 = vlaneseq
    %v629 = vshrl.u32 %v628, 7
    %v630 = vsub.s32 %v392, %v629
    %v631 = vrot.slane %v255, %v630
    %v632 = vsel %vm397, %v631, %v627
    %v633 = vlaneseq
    %v634 = vshrl.u32 %v633, 7
    %v635 = vsub.s32 %v345, %v634
    %v636 = vrot.slane %v258, %v635
    %v637 = vlaneseq
    %v638 = vshrl.u32 %v637, 7
    %v639 = vsub.s32 %v350, %v638
    %v640 = vrot.slane %v261, %v639
    %v641 = vsel %vm355, %v640, %v636
    %v642 = vlaneseq
    %v643 = vshrl.u32 %v642, 7
    %v644 = vsub.s32 %v357, %v643
    %v645 = vrot.slane %v264, %v644
    %v646 = vsel %vm362, %v645, %v641
    %v647 = vlaneseq
    %v648 = vshrl.u32 %v647, 7
    %v649 = vsub.s32 %v364, %v648
    %v650 = vrot.slane %v267, %v649
    %v651 = vsel %vm369, %v650, %v646
    %v652 = vlaneseq
    %v653 = vshrl.u32 %v652, 7
    %v654 = vsub.s32 %v371, %v653
    %v655 = vrot.slane %v270, %v654
    %v656 = vsel %vm376, %v655, %v651
    %v657 = vlaneseq
    %v658 = vshrl.u32 %v657, 7
    %v659 = vsub.s32 %v378, %v658
    %v660 = vrot.slane %v273, %v659
    %v661 = vsel %vm383, %v660, %v656
    %v662 = vlaneseq
    %v663 = vshrl.u32 %v662, 7
    %v664 = vsub.s32 %v385, %v663
    %v665 = vrot.slane %v276, %v664
    %v666 = vsel %vm390, %v665, %v661
    %v667 = vlaneseq
    %v668 = vshrl.u32 %v667, 7
    %v669 = vsub.s32 %v392, %v668
    %v670 = vrot.slane %v279, %v669
    %v671 = vsel %vm397, %v670, %v666
    %vm672 = vcmask 1041409
    %v673 = vsel %vm672, %v437, %v398
    %vm674 = vcmask 1042434
    %v675 = vsel %vm674, %v476, %v673
    %vm676 = vcmask 1043459
    %v677 = vsel %vm676, %v515, %v675
    %vm678 = vcmask 1044484
    %v679 = vsel %vm678, %v554, %v677
    %vm680 = vcmask 1045509
    %v681 = vsel %vm680, %v593, %v679
    %vm682 = vcmask 1046534
    %v683 = vsel %vm682, %v632, %v681
    %vm684 = vcmask 1047559
    %v685 = vsel %vm684, %v671, %v683
    %v687 = vadd.f32 %v86, %v685
    %vm688 = vcmask 523264
    %689 = vst.msk [vmem:[#allocation2] sm:$0xff] %vm688, %v687
    %v690 = vld [vmem:[#allocation3] sm:$0xff]
    %v691 = vsel %vm87, %v22, -inf
    %692 = vmax.xlane.f32.xlu0 %v691
    %v693 = vpop.xlane.xlu0 %692
    %v694 = vsel %vm87, %v23, -inf
    %695 = vmax.xlane.f32.xlu0 %v694
    %v696 = vpop.xlane.xlu0 %695
    %v697 = vsel %vm87, %v24, -inf
    %698 = vmax.xlane.f32.xlu0 %v697
    %v699 = vpop.xlane.xlu0 %698
    %v700 = vsel %vm87, %v25, -inf
    %701 = vmax.xlane.f32.xlu0 %v700
    %v702 = vpop.xlane.xlu0 %701
    %v703 = vsel %vm87, %v26, -inf
    %704 = vmax.xlane.f32.xlu0 %v703
    %v705 = vpop.xlane.xlu0 %704
    %v706 = vsel %vm87, %v27, -inf
    %707 = vmax.xlane.f32.xlu0 %v706
    %v708 = vpop.xlane.xlu0 %707
    %v709 = vsel %vm87, %v28, -inf
    %710 = vmax.xlane.f32.xlu0 %v709
    %v711 = vpop.xlane.xlu0 %710
    %v712 = vsel %vm87, %v29, -inf
    %713 = vmax.xlane.f32.xlu0 %v712
    %v714 = vpop.xlane.xlu0 %713
    %v715 = vsel %vm87, %v30, -inf
    %716 = vmax.xlane.f32.xlu0 %v715
    %v717 = vpop.xlane.xlu0 %716
    %v718 = vsel %vm87, %v31, -inf
    %719 = vmax.xlane.f32.xlu0 %v718
    %v720 = vpop.xlane.xlu0 %719
    %v721 = vsel %vm87, %v32, -inf
    %722 = vmax.xlane.f32.xlu0 %v721
    %v723 = vpop.xlane.xlu0 %722
    %v724 = vsel %vm87, %v33, -inf
    %725 = vmax.xlane.f32.xlu0 %v724
    %v726 = vpop.xlane.xlu0 %725
    %v727 = vsel %vm87, %v34, -inf
    %728 = vmax.xlane.f32.xlu0 %v727
    %v729 = vpop.xlane.xlu0 %728
    %v730 = vsel %vm87, %v35, -inf
    %731 = vmax.xlane.f32.xlu0 %v730
    %v732 = vpop.xlane.xlu0 %731
    %v733 = vsel %vm87, %v36, -inf
    %734 = vmax.xlane.f32.xlu0 %v733
    %v735 = vpop.xlane.xlu0 %734
    %v736 = vsel %vm87, %v37, -inf
    %737 = vmax.xlane.f32.xlu0 %v736
    %v738 = vpop.xlane.xlu0 %737
    %v739 = vsel %vm87, %v38, -inf
    %740 = vmax.xlane.f32.xlu0 %v739
    %v741 = vpop.xlane.xlu0 %740
    %v742 = vsel %vm87, %v39, -inf
    %743 = vmax.xlane.f32.xlu0 %v742
    %v744 = vpop.xlane.xlu0 %743
    %v745 = vsel %vm87, %v40, -inf
    %746 = vmax.xlane.f32.xlu0 %v745
    %v747 = vpop.xlane.xlu0 %746
    %v748 = vsel %vm87, %v41, -inf
    %749 = vmax.xlane.f32.xlu0 %v748
    %v750 = vpop.xlane.xlu0 %749
    %v751 = vsel %vm87, %v42, -inf
    %752 = vmax.xlane.f32.xlu0 %v751
    %v753 = vpop.xlane.xlu0 %752
    %v754 = vsel %vm87, %v43, -inf
    %755 = vmax.xlane.f32.xlu0 %v754
    %v756 = vpop.xlane.xlu0 %755
    %v757 = vsel %vm87, %v44, -inf
    %758 = vmax.xlane.f32.xlu0 %v757
    %v759 = vpop.xlane.xlu0 %758
    %v760 = vsel %vm87, %v45, -inf
    %761 = vmax.xlane.f32.xlu0 %v760
    %v762 = vpop.xlane.xlu0 %761
    %v763 = vsel %vm87, %v46, -inf
    %764 = vmax.xlane.f32.xlu0 %v763
    %v765 = vpop.xlane.xlu0 %764
    %v766 = vsel %vm87, %v47, -inf
    %767 = vmax.xlane.f32.xlu0 %v766
    %v768 = vpop.xlane.xlu0 %767
    %v769 = vsel %vm87, %v48, -inf
    %770 = vmax.xlane.f32.xlu0 %v769
    %v771 = vpop.xlane.xlu0 %770
    %v772 = vsel %vm87, %v49, -inf
    %773 = vmax.xlane.f32.xlu0 %v772
    %v774 = vpop.xlane.xlu0 %773
    %v775 = vsel %vm87, %v50, -inf
    %776 = vmax.xlane.f32.xlu0 %v775
    %v777 = vpop.xlane.xlu0 %776
    %v778 = vsel %vm87, %v51, -inf
    %779 = vmax.xlane.f32.xlu0 %v778
    %v780 = vpop.xlane.xlu0 %779
    %v781 = vsel %vm87, %v52, -inf
    %782 = vmax.xlane.f32.xlu0 %v781
    %v783 = vpop.xlane.xlu0 %782
    %v784 = vsel %vm87, %v53, -inf
    %785 = vmax.xlane.f32.xlu0 %v784
    %v786 = vpop.xlane.xlu0 %785
    %v787 = vsel %vm87, %v54, -inf
    %788 = vmax.xlane.f32.xlu0 %v787
    %v789 = vpop.xlane.xlu0 %788
    %v790 = vsel %vm87, %v55, -inf
    %791 = vmax.xlane.f32.xlu0 %v790
    %v792 = vpop.xlane.xlu0 %791
    %v793 = vsel %vm87, %v56, -inf
    %794 = vmax.xlane.f32.xlu0 %v793
    %v795 = vpop.xlane.xlu0 %794
    %v796 = vsel %vm87, %v57, -inf
    %797 = vmax.xlane.f32.xlu0 %v796
    %v798 = vpop.xlane.xlu0 %797
    %v799 = vsel %vm87, %v58, -inf
    %800 = vmax.xlane.f32.xlu0 %v799
    %v801 = vpop.xlane.xlu0 %800
    %v802 = vsel %vm87, %v59, -inf
    %803 = vmax.xlane.f32.xlu0 %v802
    %v804 = vpop.xlane.xlu0 %803
    %v805 = vsel %vm87, %v60, -inf
    %806 = vmax.xlane.f32.xlu0 %v805
    %v807 = vpop.xlane.xlu0 %806
    %v808 = vsel %vm87, %v61, -inf
    %809 = vmax.xlane.f32.xlu0 %v808
    %v810 = vpop.xlane.xlu0 %809
    %v811 = vsel %vm87, %v62, -inf
    %812 = vmax.xlane.f32.xlu0 %v811
    %v813 = vpop.xlane.xlu0 %812
    %v814 = vsel %vm87, %v63, -inf
    %815 = vmax.xlane.f32.xlu0 %v814
    %v816 = vpop.xlane.xlu0 %815
    %v817 = vsel %vm87, %v64, -inf
    %818 = vmax.xlane.f32.xlu0 %v817
    %v819 = vpop.xlane.xlu0 %818
    %v820 = vsel %vm87, %v65, -inf
    %821 = vmax.xlane.f32.xlu0 %v820
    %v822 = vpop.xlane.xlu0 %821
    %v823 = vsel %vm87, %v66, -inf
    %824 = vmax.xlane.f32.xlu0 %v823
    %v825 = vpop.xlane.xlu0 %824
    %v826 = vsel %vm87, %v67, -inf
    %827 = vmax.xlane.f32.xlu0 %v826
    %v828 = vpop.xlane.xlu0 %827
    %v829 = vsel %vm87, %v68, -inf
    %830 = vmax.xlane.f32.xlu0 %v829
    %v831 = vpop.xlane.xlu0 %830
    %v832 = vsel %vm87, %v69, -inf
    %833 = vmax.xlane.f32.xlu0 %v832
    %v834 = vpop.xlane.xlu0 %833
    %v835 = vsel %vm87, %v70, -inf
    %836 = vmax.xlane.f32.xlu0 %v835
    %v837 = vpop.xlane.xlu0 %836
    %v838 = vsel %vm87, %v71, -inf
    %839 = vmax.xlane.f32.xlu0 %v838
    %v840 = vpop.xlane.xlu0 %839
    %v841 = vsel %vm87, %v72, -inf
    %842 = vmax.xlane.f32.xlu0 %v841
    %v843 = vpop.xlane.xlu0 %842
    %v844 = vsel %vm87, %v73, -inf
    %845 = vmax.xlane.f32.xlu0 %v844
    %v846 = vpop.xlane.xlu0 %845
    %v847 = vsel %vm87, %v74, -inf
    %848 = vmax.xlane.f32.xlu0 %v847
    %v849 = vpop.xlane.xlu0 %848
    %v850 = vsel %vm87, %v75, -inf
    %851 = vmax.xlane.f32.xlu0 %v850
    %v852 = vpop.xlane.xlu0 %851
    %v853 = vsel %vm87, %v76, -inf
    %854 = vmax.xlane.f32.xlu0 %v853
    %v855 = vpop.xlane.xlu0 %854
    %v856 = vsel %vm87, %v77, -inf
    %857 = vmax.xlane.f32.xlu0 %v856
    %v858 = vpop.xlane.xlu0 %857
    %v859 = vsel %vm87, %v78, -inf
    %860 = vmax.xlane.f32.xlu0 %v859
    %v861 = vpop.xlane.xlu0 %860
    %v862 = vsel %vm87, %v79, -inf
    %863 = vmax.xlane.f32.xlu0 %v862
    %v864 = vpop.xlane.xlu0 %863
    %v865 = vsel %vm87, %v80, -inf
    %866 = vmax.xlane.f32.xlu0 %v865
    %v867 = vpop.xlane.xlu0 %866
    %v868 = vsel %vm87, %v81, -inf
    %869 = vmax.xlane.f32.xlu0 %v868
    %v870 = vpop.xlane.xlu0 %869
    %v871 = vsel %vm87, %v82, -inf
    %872 = vmax.xlane.f32.xlu0 %v871
    %v873 = vpop.xlane.xlu0 %872
    %v874 = vsel %vm87, %v83, -inf
    %875 = vmax.xlane.f32.xlu0 %v874
    %v876 = vpop.xlane.xlu0 %875
    %v877 = vsel %vm87, %v84, -inf
    %878 = vmax.xlane.f32.xlu0 %v877
    %v879 = vpop.xlane.xlu0 %878
    %v880 = vsel %vm87, %v85, -inf
    %881 = vmax.xlane.f32.xlu0 %v880
    %v882 = vpop.xlane.xlu0 %881
    %v947 = vlaneseq
    %v948 = vshrl.u32 %v947, 7
    %v949 = vsub.s32 %v345, %v948
    %v950 = vrot.slane %v693, %v949
    %v951 = vlaneseq
    %v952 = vshrl.u32 %v951, 7
    %v953 = vsub.s32 %v350, %v952
    %v954 = vrot.slane %v696, %v953
    %v955 = vsel %vm355, %v954, %v950
    %v956 = vlaneseq
    %v957 = vshrl.u32 %v956, 7
    %v958 = vsub.s32 %v357, %v957
    %v959 = vrot.slane %v699, %v958
    %v960 = vsel %vm362, %v959, %v955
    %v961 = vlaneseq
    %v962 = vshrl.u32 %v961, 7
    %v963 = vsub.s32 %v364, %v962
    %v964 = vrot.slane %v702, %v963
    %v965 = vsel %vm369, %v964, %v960
    %v966 = vlaneseq
    %v967 = vshrl.u32 %v966, 7
    %v968 = vsub.s32 %v371, %v967
    %v969 = vrot.slane %v705, %v968
    %v970 = vsel %vm376, %v969, %v965
    %v971 = vlaneseq
    %v972 = vshrl.u32 %v971, 7
    %v973 = vsub.s32 %v378, %v972
    %v974 = vrot.slane %v708, %v973
    %v975 = vsel %vm383, %v974, %v970
    %v976 = vlaneseq
    %v977 = vshrl.u32 %v976, 7
    %v978 = vsub.s32 %v385, %v977
    %v979 = vrot.slane %v711, %v978
    %v980 = vsel %vm390, %v979, %v975
    %v981 = vlaneseq
    %v982 = vshrl.u32 %v981, 7
    %v983 = vsub.s32 %v392, %v982
    %v984 = vrot.slane %v714, %v983
    %v985 = vsel %vm397, %v984, %v980
    %v986 = vlaneseq
    %v987 = vshrl.u32 %v986, 7
    %v988 = vsub.s32 %v345, %v987
    %v989 = vrot.slane %v717, %v988
    %v990 = vlaneseq
    %v991 = vshrl.u32 %v990, 7
    %v992 = vsub.s32 %v350, %v991
    %v993 = vrot.slane %v720, %v992
    %v994 = vsel %vm355, %v993, %v989
    %v995 = vlaneseq
    %v996 = vshrl.u32 %v995, 7
    %v997 = vsub.s32 %v357, %v996
    %v998 = vrot.slane %v723, %v997
    %v999 = vsel %vm362, %v998, %v994
    %v1000 = vlaneseq
    %v1001 = vshrl.u32 %v1000, 7
    %v1002 = vsub.s32 %v364, %v1001
    %v1003 = vrot.slane %v726, %v1002
    %v1004 = vsel %vm369, %v1003, %v999
    %v1005 = vlaneseq
    %v1006 = vshrl.u32 %v1005, 7
    %v1007 = vsub.s32 %v371, %v1006
    %v1008 = vrot.slane %v729, %v1007
    %v1009 = vsel %vm376, %v1008, %v1004
    %v1010 = vlaneseq
    %v1011 = vshrl.u32 %v1010, 7
    %v1012 = vsub.s32 %v378, %v1011
    %v1013 = vrot.slane %v732, %v1012
    %v1014 = vsel %vm383, %v1013, %v1009
    %v1015 = vlaneseq
    %v1016 = vshrl.u32 %v1015, 7
    %v1017 = vsub.s32 %v385, %v1016
    %v1018 = vrot.slane %v735, %v1017
    %v1019 = vsel %vm390, %v1018, %v1014
    %v1020 = vlaneseq
    %v1021 = vshrl.u32 %v1020, 7
    %v1022 = vsub.s32 %v392, %v1021
    %v1023 = vrot.slane %v738, %v1022
    %v1024 = vsel %vm397, %v1023, %v1019
    %v1025 = vlaneseq
    %v1026 = vshrl.u32 %v1025, 7
    %v1027 = vsub.s32 %v345, %v1026
    %v1028 = vrot.slane %v741, %v1027
    %v1029 = vlaneseq
    %v1030 = vshrl.u32 %v1029, 7
    %v1031 = vsub.s32 %v350, %v1030
    %v1032 = vrot.slane %v744, %v1031
    %v1033 = vsel %vm355, %v1032, %v1028
    %v1034 = vlaneseq
    %v1035 = vshrl.u32 %v1034, 7
    %v1036 = vsub.s32 %v357, %v1035
    %v1037 = vrot.slane %v747, %v1036
    %v1038 = vsel %vm362, %v1037, %v1033
    %v1039 = vlaneseq
    %v1040 = vshrl.u32 %v1039, 7
    %v1041 = vsub.s32 %v364, %v1040
    %v1042 = vrot.slane %v750, %v1041
    %v1043 = vsel %vm369, %v1042, %v1038
    %v1044 = vlaneseq
    %v1045 = vshrl.u32 %v1044, 7
    %v1046 = vsub.s32 %v371, %v1045
    %v1047 = vrot.slane %v753, %v1046
    %v1048 = vsel %vm376, %v1047, %v1043
    %v1049 = vlaneseq
    %v1050 = vshrl.u32 %v1049, 7
    %v1051 = vsub.s32 %v378, %v1050
    %v1052 = vrot.slane %v756, %v1051
    %v1053 = vsel %vm383, %v1052, %v1048
    %v1054 = vlaneseq
    %v1055 = vshrl.u32 %v1054, 7
    %v1056 = vsub.s32 %v385, %v1055
    %v1057 = vrot.slane %v759, %v1056
    %v1058 = vsel %vm390, %v1057, %v1053
    %v1059 = vlaneseq
    %v1060 = vshrl.u32 %v1059, 7
    %v1061 = vsub.s32 %v392, %v1060
    %v1062 = vrot.slane %v762, %v1061
    %v1063 = vsel %vm397, %v1062, %v1058
    %v1064 = vlaneseq
    %v1065 = vshrl.u32 %v1064, 7
    %v1066 = vsub.s32 %v345, %v1065
    %v1067 = vrot.slane %v765, %v1066
    %v1068 = vlaneseq
    %v1069 = vshrl.u32 %v1068, 7
    %v1070 = vsub.s32 %v350, %v1069
    %v1071 = vrot.slane %v768, %v1070
    %v1072 = vsel %vm355, %v1071, %v1067
    %v1073 = vlaneseq
    %v1074 = vshrl.u32 %v1073, 7
    %v1075 = vsub.s32 %v357, %v1074
    %v1076 = vrot.slane %v771, %v1075
    %v1077 = vsel %vm362, %v1076, %v1072
    %v1078 = vlaneseq
    %v1079 = vshrl.u32 %v1078, 7
    %v1080 = vsub.s32 %v364, %v1079
    %v1081 = vrot.slane %v774, %v1080
    %v1082 = vsel %vm369, %v1081, %v1077
    %v1083 = vlaneseq
    %v1084 = vshrl.u32 %v1083, 7
    %v1085 = vsub.s32 %v371, %v1084
    %v1086 = vrot.slane %v777, %v1085
    %v1087 = vsel %vm376, %v1086, %v1082
    %v1088 = vlaneseq
    %v1089 = vshrl.u32 %v1088, 7
    %v1090 = vsub.s32 %v378, %v1089
    %v1091 = vrot.slane %v780, %v1090
    %v1092 = vsel %vm383, %v1091, %v1087
    %v1093 = vlaneseq
    %v1094 = vshrl.u32 %v1093, 7
    %v1095 = vsub.s32 %v385, %v1094
    %v1096 = vrot.slane %v783, %v1095
    %v1097 = vsel %vm390, %v1096, %v1092
    %v1098 = vlaneseq
    %v1099 = vshrl.u32 %v1098, 7
    %v1100 = vsub.s32 %v392, %v1099
    %v1101 = vrot.slane %v786, %v1100
    %v1102 = vsel %vm397, %v1101, %v1097
    %v1103 = vlaneseq
    %v1104 = vshrl.u32 %v1103, 7
    %v1105 = vsub.s32 %v345, %v1104
    %v1106 = vrot.slane %v789, %v1105
    %v1107 = vlaneseq
    %v1108 = vshrl.u32 %v1107, 7
    %v1109 = vsub.s32 %v350, %v1108
    %v1110 = vrot.slane %v792, %v1109
    %v1111 = vsel %vm355, %v1110, %v1106
    %v1112 = vlaneseq
    %v1113 = vshrl.u32 %v1112, 7
    %v1114 = vsub.s32 %v357, %v1113
    %v1115 = vrot.slane %v795, %v1114
    %v1116 = vsel %vm362, %v1115, %v1111
    %v1117 = vlaneseq
    %v1118 = vshrl.u32 %v1117, 7
    %v1119 = vsub.s32 %v364, %v1118
    %v1120 = vrot.slane %v798, %v1119
    %v1121 = vsel %vm369, %v1120, %v1116
    %v1122 = vlaneseq
    %v1123 = vshrl.u32 %v1122, 7
    %v1124 = vsub.s32 %v371, %v1123
    %v1125 = vrot.slane %v801, %v1124
    %v1126 = vsel %vm376, %v1125, %v1121
    %v1127 = vlaneseq
    %v1128 = vshrl.u32 %v1127, 7
    %v1129 = vsub.s32 %v378, %v1128
    %v1130 = vrot.slane %v804, %v1129
    %v1131 = vsel %vm383, %v1130, %v1126
    %v1132 = vlaneseq
    %v1133 = vshrl.u32 %v1132, 7
    %v1134 = vsub.s32 %v385, %v1133
    %v1135 = vrot.slane %v807, %v1134
    %v1136 = vsel %vm390, %v1135, %v1131
    %v1137 = vlaneseq
    %v1138 = vshrl.u32 %v1137, 7
    %v1139 = vsub.s32 %v392, %v1138
    %v1140 = vrot.slane %v810, %v1139
    %v1141 = vsel %vm397, %v1140, %v1136
    %v1142 = vlaneseq
    %v1143 = vshrl.u32 %v1142, 7
    %v1144 = vsub.s32 %v345, %v1143
    %v1145 = vrot.slane %v813, %v1144
    %v1146 = vlaneseq
    %v1147 = vshrl.u32 %v1146, 7
    %v1148 = vsub.s32 %v350, %v1147
    %v1149 = vrot.slane %v816, %v1148
    %v1150 = vsel %vm355, %v1149, %v1145
    %v1151 = vlaneseq
    %v1152 = vshrl.u32 %v1151, 7
    %v1153 = vsub.s32 %v357, %v1152
    %v1154 = vrot.slane %v819, %v1153
    %v1155 = vsel %vm362, %v1154, %v1150
    %v1156 = vlaneseq
    %v1157 = vshrl.u32 %v1156, 7
    %v1158 = vsub.s32 %v364, %v1157
    %v1159 = vrot.slane %v822, %v1158
    %v1160 = vsel %vm369, %v1159, %v1155
    %v1161 = vlaneseq
    %v1162 = vshrl.u32 %v1161, 7
    %v1163 = vsub.s32 %v371, %v1162
    %v1164 = vrot.slane %v825, %v1163
    %v1165 = vsel %vm376, %v1164, %v1160
    %v1166 = vlaneseq
    %v1167 = vshrl.u32 %v1166, 7
    %v1168 = vsub.s32 %v378, %v1167
    %v1169 = vrot.slane %v828, %v1168
    %v1170 = vsel %vm383, %v1169, %v1165
    %v1171 = vlaneseq
    %v1172 = vshrl.u32 %v1171, 7
    %v1173 = vsub.s32 %v385, %v1172
    %v1174 = vrot.slane %v831, %v1173
    %v1175 = vsel %vm390, %v1174, %v1170
    %v1176 = vlaneseq
    %v1177 = vshrl.u32 %v1176, 7
    %v1178 = vsub.s32 %v392, %v1177
    %v1179 = vrot.slane %v834, %v1178
    %v1180 = vsel %vm397, %v1179, %v1175
    %v1181 = vlaneseq
    %v1182 = vshrl.u32 %v1181, 7
    %v1183 = vsub.s32 %v345, %v1182
    %v1184 = vrot.slane %v837, %v1183
    %v1185 = vlaneseq
    %v1186 = vshrl.u32 %v1185, 7
    %v1187 = vsub.s32 %v350, %v1186
    %v1188 = vrot.slane %v840, %v1187
    %v1189 = vsel %vm355, %v1188, %v1184
    %v1190 = vlaneseq
    %v1191 = vshrl.u32 %v1190, 7
    %v1192 = vsub.s32 %v357, %v1191
    %v1193 = vrot.slane %v843, %v1192
    %v1194 = vsel %vm362, %v1193, %v1189
    %v1195 = vlaneseq
    %v1196 = vshrl.u32 %v1195, 7
    %v1197 = vsub.s32 %v364, %v1196
    %v1198 = vrot.slane %v846, %v1197
    %v1199 = vsel %vm369, %v1198, %v1194
    %v1200 = vlaneseq
    %v1201 = vshrl.u32 %v1200, 7
    %v1202 = vsub.s32 %v371, %v1201
    %v1203 = vrot.slane %v849, %v1202
    %v1204 = vsel %vm376, %v1203, %v1199
    %v1205 = vlaneseq
    %v1206 = vshrl.u32 %v1205, 7
    %v1207 = vsub.s32 %v378, %v1206
    %v1208 = vrot.slane %v852, %v1207
    %v1209 = vsel %vm383, %v1208, %v1204
    %v1210 = vlaneseq
    %v1211 = vshrl.u32 %v1210, 7
    %v1212 = vsub.s32 %v385, %v1211
    %v1213 = vrot.slane %v855, %v1212
    %v1214 = vsel %vm390, %v1213, %v1209
    %v1215 = vlaneseq
    %v1216 = vshrl.u32 %v1215, 7
    %v1217 = vsub.s32 %v392, %v1216
    %v1218 = vrot.slane %v858, %v1217
    %v1219 = vsel %vm397, %v1218, %v1214
    %v1220 = vlaneseq
    %v1221 = vshrl.u32 %v1220, 7
    %v1222 = vsub.s32 %v345, %v1221
    %v1223 = vrot.slane %v861, %v1222
    %v1224 = vlaneseq
    %v1225 = vshrl.u32 %v1224, 7
    %v1226 = vsub.s32 %v350, %v1225
    %v1227 = vrot.slane %v864, %v1226
    %v1228 = vsel %vm355, %v1227, %v1223
    %v1229 = vlaneseq
    %v1230 = vshrl.u32 %v1229, 7
    %v1231 = vsub.s32 %v357, %v1230
    %v1232 = vrot.slane %v867, %v1231
    %v1233 = vsel %vm362, %v1232, %v1228
    %v1234 = vlaneseq
    %v1235 = vshrl.u32 %v1234, 7
    %v1236 = vsub.s32 %v364, %v1235
    %v1237 = vrot.slane %v870, %v1236
    %v1238 = vsel %vm369, %v1237, %v1233
    %v1239 = vlaneseq
    %v1240 = vshrl.u32 %v1239, 7
    %v1241 = vsub.s32 %v371, %v1240
    %v1242 = vrot.slane %v873, %v1241
    %v1243 = vsel %vm376, %v1242, %v1238
    %v1244 = vlaneseq
    %v1245 = vshrl.u32 %v1244, 7
    %v1246 = vsub.s32 %v378, %v1245
    %v1247 = vrot.slane %v876, %v1246
    %v1248 = vsel %vm383, %v1247, %v1243
    %v1249 = vlaneseq
    %v1250 = vshrl.u32 %v1249, 7
    %v1251 = vsub.s32 %v385, %v1250
    %v1252 = vrot.slane %v879, %v1251
    %v1253 = vsel %vm390, %v1252, %v1248
    %v1254 = vlaneseq
    %v1255 = vshrl.u32 %v1254, 7
    %v1256 = vsub.s32 %v392, %v1255
    %v1257 = vrot.slane %v882, %v1256
    %v1258 = vsel %vm397, %v1257, %v1253
    %v1259 = vsel %vm672, %v1024, %v985
    %v1260 = vsel %vm674, %v1063, %v1259
    %v1261 = vsel %vm676, %v1102, %v1260
    %v1262 = vsel %vm678, %v1141, %v1261
    %v1263 = vsel %vm680, %v1180, %v1262
    %v1264 = vsel %vm682, %v1219, %v1263
    %v1265 = vsel %vm684, %v1258, %v1264
    %v1267 = vmax.f32 %v690, %v1265
    %1268 = vst.msk [vmem:[#allocation3] sm:$0xff] %vm688, %v1267
    // Predicated region
    $region18: #{tpu_custom_call.1} parent=1 // pred_check
      %p1269 = pneg %p15
    $region19: #{tpu_custom_call.1} parent=1 // pred_check_branch
      %1271 = sbr.rel (%p1269) target = $region21
    $region20: #{tpu_custom_call.1} parent=1 // pred_region
      %v1272 = vld [vmem:[%s1] sm:$0xf]
      %v1273 = vld [vmem:[%s2] sm:$0xff]
      %v1274 = vld [vmem:[%s2 + $0x8] sm:$0xff]
      %v1275 = vld [vmem:[%s2 + $0x10] sm:$0xff]
      %v1276 = vld [vmem:[%s2 + $0x18] sm:$0xff]
      %v1277 = vld [vmem:[%s2 + $0x20] sm:$0xff]
      %v1278 = vld [vmem:[%s2 + $0x28] sm:$0xff]
      %v1279 = vld [vmem:[%s2 + $0x30] sm:$0xff]
      %v1280 = vld [vmem:[%s2 + $0x38] sm:$0xff]
      %v1281 = vld [vmem:[#allocation2] sm:$0xff]
      %v1282 = vmul.f32 %v1281, 0.0625
      %v1283 = vld [vmem:[#allocation3] sm:$0xff]
      %v1285 = vsel %vm688, %v1282, 0
      %v1288 = vsel %vm688, %v1283, 0
      %v1291 = vsel %vm688, %v1272, 0
      %1293 = vmatprep.subr.mxu0 0.0
      %1294 = vmatpush1.xpose.msra.mxu0 0.0
      %1295 = vmatprep.subr.mxu0 0.0
      %1296 = vmatpush1.xpose.msra.mxu0 0.0
      %1297 = vmatprep.subr.mxu0 0.0
      %1298 = vmatpush1.xpose.msra.mxu0 0.0
      %1299 = vmatprep.subr.mxu0 0.0
      %1300 = vmatpush1.xpose.msra.mxu0 0.0
      %1301 = vmatprep.subr.mxu0 0.0
      %1302 = vmatpush1.xpose.msra.mxu0 0.0
      %1303 = vmatprep.subr.mxu0 0.0
      %1304 = vmatpush1.xpose.msra.mxu0 0.0
      %1305 = vmatprep.subr.mxu0 0.0
      %1306 = vmatpush1.xpose.msra.mxu0 0.0
      %1307 = vmatprep.subr.mxu0 0.0
      %1308 = vmatpush1.xpose.msra.mxu0 0.0
      %1309 = vmatprep.subr.mxu0 0.0
      %1310 = vmatpush1.xpose.msra.mxu0 0.0
      %1311 = vmatprep.subr.mxu0 0.0
      %1312 = vmatpush1.xpose.msra.mxu0 0.0
      %1313 = vmatprep.subr.mxu0 0.0
      %1314 = vmatpush1.xpose.msra.mxu0 0.0
      %1315 = vmatprep.subr.mxu0 0.0
      %1316 = vmatpush1.xpose.msra.mxu0 0.0
      %1317 = vmatprep.subr.mxu0 0.0
      %1318 = vmatpush1.xpose.msra.mxu0 0.0
      %1319 = vmatprep.subr.mxu0 0.0
      %1320 = vmatpush1.xpose.msra.mxu0 0.0
      %1321 = vmatprep.subr.mxu0 0.0
      %1322 = vmatpush1.xpose.msra.mxu0 0.0
      %1323 = vmatprep.subr.mxu0 0.0
      %1324 = vmatpush1.xpose.msra.mxu0 %v1291
      %1325 = vmatprep.subr.mxu0 0.0
      %1326 = vmatpush2.xpose.msra.mxu0 0.0
      %1327 = vmatprep.subr.mxu0 0.0
      %1328 = vmatpush2.xpose.msra.mxu0 0.0
      %1329 = vmatprep.subr.mxu0 0.0
      %1330 = vmatpush2.xpose.msra.mxu0 0.0
      %1331 = vmatprep.subr.mxu0 0.0
      %1332 = vmatpush2.xpose.msra.mxu0 0.0
      %1333 = vmatprep.subr.mxu0 0.0
      %1334 = vmatpush2.xpose.msra.mxu0 0.0
      %1335 = vmatprep.subr.mxu0 0.0
      %1336 = vmatpush2.xpose.msra.mxu0 0.0
      %1337 = vmatprep.subr.mxu0 0.0
      %1338 = vmatpush2.xpose.msra.mxu0 0.0
      %1339 = vmatprep.subr.mxu0 0.0
      %1340 = vmatpush2.xpose.msra.mxu0 0.0
      %1341 = vmatprep.subr.mxu0 0.0
      %1342 = vmatpush2.xpose.msra.mxu0 0.0
      %1343 = vmatprep.subr.mxu0 0.0
      %1344 = vmatpush2.xpose.msra.mxu0 0.0
      %1345 = vmatprep.subr.mxu0 0.0
      %1346 = vmatpush2.xpose.msra.mxu0 0.0
      %1347 = vmatprep.subr.mxu0 0.0
      %1348 = vmatpush2.xpose.msra.mxu0 0.0
      %1349 = vmatprep.subr.mxu0 0.0
      %1350 = vmatpush2.xpose.msra.mxu0 0.0
      %1351 = vmatprep.subr.mxu0 0.0
      %1352 = vmatpush2.xpose.msra.mxu0 0.0
      %1353 = vmatprep.subr.mxu0 0.0
      %1354 = vmatpush2.xpose.msra.mxu0 0.0
      %1355 = vmatprep.subr.mxu0 0.0
      %1356 = vmatpush2.xpose.msra.mxu0 0.0
      %1357 = vmatprep.mubr.f32.mxu0 0.0
      %1358 = vmatmul.mubr.f32.gmra.mxu0 %v1285
      %v1359 = vpop.f32.mrf.mxu0
      %v1360 = vadd.f32 0.0, %v1359
      %v1361 = vpop.f32.mrf.mxu0
      %1362 = vmatprep.mubr.f32.mxu0 0.0
      %1363 = vmatmul.mubr.f32.gmra.mxu0 %v1288
      %v1364 = vpop.f32.mrf.mxu0
      %v1365 = vadd.f32 0.0, %v1364
      %v1366 = vpop.f32.mrf.mxu0
      %1367 = vdwg.mxu0
      %v1368 = vmax.f32 %v1360, 0.0
      %v1369 = vmax.f32 %v1365, 0.0
      %vm1370 = vcmask 31744
      %v1372 = vsel %vm1370, %v1368, 0
      %v1375 = vsel %vm1370, %v1369, 0
      %v1378 = vsel %vm1370, %v1273, 0
      %v1381 = vsel %vm1370, %v1274, 0
      %v1384 = vsel %vm1370, %v1275, 0
      %v1387 = vsel %vm1370, %v1276, 0
      %v1390 = vsel %vm1370, %v1277, 0
      %v1393 = vsel %vm1370, %v1278, 0
      %v1396 = vsel %vm1370, %v1279, 0
      %v1399 = vsel %vm1370, %v1280, 0
      %1401 = vmatprep.subr.mxu0 0.0
      %1402 = vmatpush1.xpose.msra.mxu0 0.0
      %1403 = vmatprep.subr.mxu0 0.0
      %1404 = vmatpush1.xpose.msra.mxu0 0.0
      %1405 = vmatprep.subr.mxu0 0.0
      %1406 = vmatpush1.xpose.msra.mxu0 0.0
      %1407 = vmatprep.subr.mxu0 0.0
      %1408 = vmatpush1.xpose.msra.mxu0 0.0
      %1409 = vmatprep.subr.mxu0 0.0
      %1410 = vmatpush1.xpose.msra.mxu0 0.0
      %1411 = vmatprep.subr.mxu0 0.0
      %1412 = vmatpush1.xpose.msra.mxu0 0.0
      %1413 = vmatprep.subr.mxu0 0.0
      %1414 = vmatpush1.xpose.msra.mxu0 0.0
      %1415 = vmatprep.subr.mxu0 0.0
      %1416 = vmatpush1.xpose.msra.mxu0 0.0
      %1417 = vmatprep.subr.mxu0 0.0
      %1418 = vmatpush1.xpose.msra.mxu0 %v1399
      %1419 = vmatprep.subr.mxu0 0.0
      %1420 = vmatpush1.xpose.msra.mxu0 %v1396
      %1421 = vmatprep.subr.mxu0 0.0
      %1422 = vmatpush1.xpose.msra.mxu0 %v1393
      %1423 = vmatprep.subr.mxu0 0.0
      %1424 = vmatpush1.xpose.msra.mxu0 %v1390
      %1425 = vmatprep.subr.mxu0 0.0
      %1426 = vmatpush1.xpose.msra.mxu0 %v1387
      %1427 = vmatprep.subr.mxu0 0.0
      %1428 = vmatpush1.xpose.msra.mxu0 %v1384
      %1429 = vmatprep.subr.mxu0 0.0
      %1430 = vmatpush1.xpose.msra.mxu0 %v1381
      %1431 = vmatprep.subr.mxu0 0.0
      %1432 = vmatpush1.xpose.msra.mxu0 %v1378
      %1433 = vmatprep.subr.mxu0 0.0
      %1434 = vmatpush2.xpose.msra.mxu0 0.0
      %1435 = vmatprep.subr.mxu0 0.0
      %1436 = vmatpush2.xpose.msra.mxu0 0.0
      %1437 = vmatprep.subr.mxu0 0.0
      %1438 = vmatpush2.xpose.msra.mxu0 0.0
      %1439 = vmatprep.subr.mxu0 0.0
      %1440 = vmatpush2.xpose.msra.mxu0 0.0
      %1441 = vmatprep.subr.mxu0 0.0
      %1442 = vmatpush2.xpose.msra.mxu0 0.0
      %1443 = vmatprep.subr.mxu0 0.0
      %1444 = vmatpush2.xpose.msra.mxu0 0.0
      %1445 = vmatprep.subr.mxu0 0.0
      %1446 = vmatpush2.xpose.msra.mxu0 0.0
      %1447 = vmatprep.subr.mxu0 0.0
      %1448 = vmatpush2.xpose.msra.mxu0 0.0
      %1449 = vmatprep.subr.mxu0 0.0
      %1450 = vmatpush2.xpose.msra.mxu0 0.0
      %1451 = vmatprep.subr.mxu0 0.0
      %1452 = vmatpush2.xpose.msra.mxu0 0.0
      %1453 = vmatprep.subr.mxu0 0.0
      %1454 = vmatpush2.xpose.msra.mxu0 0.0
      %1455 = vmatprep.subr.mxu0 0.0
      %1456 = vmatpush2.xpose.msra.mxu0 0.0
      %1457 = vmatprep.subr.mxu0 0.0
      %1458 = vmatpush2.xpose.msra.mxu0 0.0
      %1459 = vmatprep.subr.mxu0 0.0
      %1460 = vmatpush2.xpose.msra.mxu0 0.0
      %1461 = vmatprep.subr.mxu0 0.0
      %1462 = vmatpush2.xpose.msra.mxu0 0.0
      %1463 = vmatprep.subr.mxu0 0.0
      %1464 = vmatpush2.xpose.msra.mxu0 0.0
      %1465 = vmatprep.mubr.f32.mxu0 0.0
      %1466 = vmatmul.mubr.f32.gmra.mxu0 %v1372
      %v1467 = vpop.f32.mrf.mxu0
      %v1468 = vadd.f32 0.0, %v1467
      %v1469 = vpop.f32.mrf.mxu0
      %1470 = vmatprep.mubr.f32.mxu0 0.0
      %1471 = vmatmul.mubr.f32.gmra.mxu0 %v1375
      %v1472 = vpop.f32.mrf.mxu0
      %v1473 = vadd.f32 0.0, %v1472
      %v1474 = vpop.f32.mrf.mxu0
      %1475 = vdwg.mxu0
      %v1476 = vadd.f32 %v1468, %v1473
      %v1477 = vxor.u32 %v1476, 2147483648
      %v1478 = vmul.f32 %v1477, 1.442695
      %v1479 = vpow.pop %v1478
      %v1480 = vadd.f32 %v1479, 1.0
      %v1481 = vrcp.pop %v1480
      %v1482 = vmul.f32 1.0, %v1481
      %1483 = vst.msk [vmem:[#allocation4] sm:$0xff] %vm688, %v1482
    $region21: #{tpu_custom_call.1} parent=1 // pred_fallthru
      _
    // Predicated region
    $region22: #{tpu_custom_call.1} parent=1 // pred_check
      _
    $region23: #{tpu_custom_call.1} parent=1 // pred_check_branch
      %1485 = sbr.rel (0) target = $region25
    $region24: #{tpu_custom_call.1} parent=1 // pred_region
      %s1487 = ssub.s32 128, 128
      %1488 = vsyncadd [#allocation5], %s1487
      %s1490 = sshll.u32 [#allocation4], 4
      %s1491 = int_to_ptr.vmem [resolvable:$true] %s1490
      %1493 = dma.vmem_to_hbm [thread:$0]  %s1491, 128, %s3, [#allocation5]
    $region25: #{tpu_custom_call.1} parent=1 // pred_fallthru
      _
    // Predicated region
    $region26: #{tpu_custom_call.1} parent=1 // pred_check
      _
    $region27: #{tpu_custom_call.1} parent=1 // pred_check_branch
      %1495 = sbr.rel (0) target = $region29
    $region28: #{tpu_custom_call.1} parent=1 // pred_region
      %1496 = dma.done [#allocation5], 128
    $region29: #{tpu_custom_call.1} parent=1 // pred_fallthru
      _
    %1497 = vsyncpa [#allocation5], 1

</llo_original>
